<compile_context>
chip_gen: v7x
topology: tpu7x:2x2x1
jax: 0.10.0
libtpu: 0.0.40
codegen_flags: <defaults>
</compile_context>

<pallas_src>
import functools
import math

import jax
import jax.numpy as jnp
from jax.experimental import pallas as pl
from jax.experimental.pallas import tpu as pltpu

_VMEM_LIMIT = 32 * 1024 * 1024  # safe on v5e/v6e/v7x; above v5e's 16 MiB default


# ----------------------------------------------------------------------------
# Kernels
# ----------------------------------------------------------------------------
def linear_kernel(x_ref, w_ref, b_ref, o_ref):
    """One M-tile of y = x @ w + b.   x:(TM,K)  w:(K,N)  b:(1,N)  ->  o:(TM,N)."""
    acc = jnp.dot(x_ref[...], w_ref[...], preferred_element_type=jnp.float32)
    o_ref[...] = (acc + b_ref[...].astype(jnp.float32)).astype(o_ref.dtype)


def attn_core_kernel(q_ref, k_ref, v_ref, probs_ref, ctx_ref, *, scale):
    """One (batch, head) slice: scores -> softmax -> context.

    q/k/v refs: (N, d).   probs: (N, N).   ctx: (N, d).
    """
    q = q_ref[...]
    k = k_ref[...]
    v = v_ref[...]
    # Q K^T on the MXU, f32 accumulation, scaled by 1/sqrt(head_dim).
    s = jnp.dot(q, k.T, preferred_element_type=jnp.float32) * scale
    # Numerically stable softmax over the last axis (f32 throughout).
    m = jnp.max(s, axis=-1, keepdims=True)
    p = jnp.exp(s - m)
    p = p / jnp.sum(p, axis=-1, keepdims=True)
    probs_ref[...] = p.astype(probs_ref.dtype)
    # TODO(synk): attn_dropout is identity (eval mode); training-mode dropout
    # would mask `p` here with pltpu.prng_random_bits.
    ctx_ref[...] = jnp.dot(p.astype(v.dtype), v,
                           preferred_element_type=jnp.float32).astype(ctx_ref.dtype)


# ----------------------------------------------------------------------------
# Wrappers
# ----------------------------------------------------------------------------
def _linear(x2d, w, b, *, tile_m=256):
    """y = x2d @ w + b, tiled over rows; weights/bias stay VMEM-resident."""
    M, K = x2d.shape
    Nout = w.shape[1]
    tm = min(tile_m, M)
    mp = pl.cdiv(M, tm) * tm
    x_p = jnp.pad(x2d, ((0, mp - M), (0, 0))) if mp != M else x2d
    b2d = b.reshape(1, Nout)

    out = pl.pallas_call(
        linear_kernel,
        out_shape=jax.ShapeDtypeStruct((mp, Nout), x2d.dtype),
        grid_spec=pltpu.PrefetchScalarGridSpec(
            num_scalar_prefetch=0,
            grid=(mp // tm,),
            in_specs=[
                pl.BlockSpec((tm, K), lambda i: (i, 0)),    # activation tile (pipelined)
                pl.BlockSpec((K, Nout), lambda i: (0, 0)),  # weights resident across grid
                pl.BlockSpec((1, Nout), lambda i: (0, 0)),  # bias resident
            ],
            out_specs=pl.BlockSpec((tm, Nout), lambda i: (i, 0)),
        ),
        compiler_params=pltpu.CompilerParams(
            dimension_semantics=("parallel",),   # megacore: M tiles split across TCs
            vmem_limit_bytes=_VMEM_LIMIT),
        cost_estimate=pl.CostEstimate(
            flops=2 * mp * K * Nout,
            transcendentals=0,
            bytes_accessed=(mp * K + K * Nout + Nout + mp * Nout)
            * x2d.dtype.itemsize),
    )(x_p, w, b2d)
    return out[:M]


def attention_forward(x, wq, bq, wk, bk, wv, bv, wo, bo, *, num_heads,
                      compute_dtype=None, tile_m=256):
    """ViT Attention forward.  x: (B, N, H); weights stored as (in, out) = W^T.

    Returns (attention_output (B, N, H), weights (B, num_heads, N, N)).
    Dropout is identity (eval).  compute_dtype=jnp.bfloat16 feeds the MXU bf16
    operands with f32 accumulation for production-sized inputs.
    """
    B, N, H = x.shape
    d = H // num_heads
    assert num_heads * d == H
    if compute_dtype is not None:
        x, wq, bq, wk, bk, wv, bv, wo, bo = (
            t.astype(compute_dtype) for t in (x, wq, bq, wk, bk, wv, bv, wo, bo))
    M = B * N
    x2d = x.reshape(M, H)

    # Fused QKV projection: one (M,H) x (H,3H) matmul keeps the MXU fed.
    wqkv = jnp.concatenate([wq, wk, wv], axis=1)
    bqkv = jnp.concatenate([bq, bk, bv], axis=0)
    qkv = _linear(x2d, wqkv, bqkv, tile_m=tile_m)            # (M, 3H)
    q, k, v = jnp.split(qkv, 3, axis=1)

    def to_heads(t):  # (M, H) -> (B*heads, N, d)
        return (t.reshape(B, N, num_heads, d)
                 .transpose(0, 2, 1, 3)
                 .reshape(B * num_heads, N, d))

    qh, kh, vh = to_heads(q), to_heads(k), to_heads(v)
    bh = B * num_heads
    itemsize = x.dtype.itemsize

    probs, ctx = pl.pallas_call(
        functools.partial(attn_core_kernel, scale=1.0 / math.sqrt(d)),
        out_shape=(jax.ShapeDtypeStruct((bh, N, N), x.dtype),
                   jax.ShapeDtypeStruct((bh, N, d), x.dtype)),
        grid_spec=pltpu.PrefetchScalarGridSpec(
            num_scalar_prefetch=0,
            grid=(bh,),  # one (batch, head) slice per grid step, auto-pipelined
            in_specs=[pl.BlockSpec((None, N, d), lambda i: (i, 0, 0))] * 3,
            out_specs=(pl.BlockSpec((None, N, N), lambda i: (i, 0, 0)),
                       pl.BlockSpec((None, N, d), lambda i: (i, 0, 0))),
        ),
        compiler_params=pltpu.CompilerParams(
            dimension_semantics=("parallel",),
            vmem_limit_bytes=_VMEM_LIMIT),
        cost_estimate=pl.CostEstimate(
            flops=4 * bh * N * N * d,          # QK^T + PV
            transcendentals=bh * N * N,        # exp
            bytes_accessed=(4 * bh * N * d + bh * N * N) * itemsize),
    )(qh, kh, vh)

    weights = probs.reshape(B, num_heads, N, N)
    ctx2d = (ctx.reshape(B, num_heads, N, d)
                .transpose(0, 2, 1, 3)
                .reshape(M, H))

    # Output projection.  TODO(synk): proj_dropout is identity (eval mode).
    out2d = _linear(ctx2d, wo, bo, tile_m=tile_m)
    return out2d.reshape(B, N, H), weights


# ----------------------------------------------------------------------------
# Reference + demo
# ----------------------------------------------------------------------------
def _ref_attention(x, wq, bq, wk, bk, wv, bv, wo, bo, num_heads):
    B, N, H = x.shape
    d = H // num_heads
    q = x @ wq + bq
    k = x @ wk + bk
    v = x @ wv + bv

    def heads(t):
        return t.reshape(B, N, num_heads, d).transpose(0, 2, 1, 3)

    qh, kh, vh = heads(q), heads(k), heads(v)
    s = jnp.einsum("bhqd,bhkd->bhqk", qh, kh) * (1.0 / math.sqrt(d))
    p = jax.nn.softmax(s, axis=-1)
    ctx = jnp.einsum("bhqk,bhkd->bhqd", p, vh)
    ctx = ctx.transpose(0, 2, 1, 3).reshape(B, N, H)
    return ctx @ wo + bo, p


def _xavier_uniform(key, fan_in, fan_out, dtype=jnp.float32):
    a = math.sqrt(6.0 / (fan_in + fan_out))
    return jax.random.uniform(key, (fan_in, fan_out), dtype, minval=-a, maxval=a)


if __name__ == "__main__":
    # Small config consistent with the module: hidden_size=32, num_heads=4.
    B, N, H, num_heads = 2, 8, 32, 4

    key = jax.random.PRNGKey(0)
    ks = jax.random.split(key, 9)
    x = jax.random.normal(ks[0], (B, N, H), jnp.float32)

    # Parameters stored already transposed to (in, out) for the kernel.
    wq = _xavier_uniform(ks[1], H, H); bq = 1e-2 * jax.random.normal(ks[2], (H,))
    wk = _xavier_uniform(ks[3], H, H); bk = 1e-2 * jax.random.normal(ks[4], (H,))
    wv = _xavier_uniform(ks[5], H, H); bv = 1e-2 * jax.random.normal(ks[6], (H,))
    wo = _xavier_uniform(ks[7], H, H); bo = 1e-2 * jax.random.normal(ks[8], (H,))

    out, weights = attention_forward(x, wq, bq, wk, bk, wv, bv, wo, bo,
                                     num_heads=num_heads)
    out = jax.block_until_ready(out)
    weights = jax.block_until_ready(weights)

    ref_out, ref_w = _ref_attention(x, wq, bq, wk, bk, wv, bv, wo, bo, num_heads)
    assert out.shape == (B, N, H) and weights.shape == (B, num_heads, N, N)
    assert jnp.allclose(out, ref_out, atol=1e-5, rtol=1e-5)
    assert jnp.allclose(weights, ref_w, atol=1e-5, rtol=1e-5)

    print("KERNEL_OK")
</pallas_src>

<mosaic_0001>
module attributes {stable_mosaic.version = 11 : i64} {
  func.func @linear_kernel(%arg0: i32, %arg1: memref<16x32xf32, #tpu.memory_space<vmem>>, %arg2: memref<32x96xf32, #tpu.memory_space<vmem>>, %arg3: memref<1x96xf32, #tpu.memory_space<vmem>>, %arg4: memref<16x96xf32, #tpu.memory_space<vmem>>) attributes {dimension_semantics = [#tpu.dimension_semantics<parallel>], iteration_bounds = array<i64: 1>, scalar_prefetch = 0 : i64, scratch_operands = 0 : i64, tpu.core_type = #tpu.core_type<tc>, window_params = [{transform_indices = @transform_0, window_bounds = array<i64: 16, 32>}, {pipeline_mode = #tpu.pipeline_mode<synchronous>, transform_indices = @transform_1, window_bounds = array<i64: 32, 96>}, {pipeline_mode = #tpu.pipeline_mode<synchronous>, transform_indices = @transform_2, window_bounds = array<i64: 1, 96>}, {transform_indices = @transform_3, window_bounds = array<i64: 16, 96>}]} {
    %c0 = arith.constant 0 : index
    %c0_0 = arith.constant 0 : index
    %0 = vector.load %arg1[%c0, %c0_0] : memref<16x32xf32, #tpu.memory_space<vmem>>, vector<16x32xf32>
    %c0_1 = arith.constant 0 : index
    %c0_2 = arith.constant 0 : index
    %1 = vector.load %arg2[%c0_1, %c0_2] : memref<32x96xf32, #tpu.memory_space<vmem>>, vector<32x96xf32>
    %cst = arith.constant dense<0.000000e+00> : vector<16x96xf32>
    %2 = tpu.matmul %0, %1, %cst {dimension_numbers = #tpu.dot_dimension_numbers<[1], [0], [0], [1], [0, 0, 1, 1], [], []>} : vector<16x32xf32>, vector<32x96xf32>, vector<16x96xf32> -> vector<16x96xf32>
    %c0_3 = arith.constant 0 : index
    %c0_4 = arith.constant 0 : index
    %3 = vector.load %arg3[%c0_3, %c0_4] : memref<1x96xf32, #tpu.memory_space<vmem>>, vector<1x96xf32>
    %4 = vector.broadcast %3 : vector<1x96xf32> to vector<16x96xf32>
    %5 = arith.addf %2, %4 : vector<16x96xf32>
    %c0_5 = arith.constant 0 : index
    %c0_6 = arith.constant 0 : index
    %6 = vector.load %arg4[%c0_5, %c0_6] : memref<16x96xf32, #tpu.memory_space<vmem>>, vector<16x96xf32>
    tpu.vector_store %arg4[%c0_5, %c0_6], %5 {strides = array<i32>} : memref<16x96xf32, #tpu.memory_space<vmem>>, vector<16x96xf32>,
    return
  }
  func.func @transform_0(%arg0: i32) -> (i32, i32) {
    %c0_i32 = arith.constant 0 : i32
    %c0_i32_0 = arith.constant 0 : i32
    return %arg0, %c0_i32 : i32, i32
  }
  func.func @transform_1(%arg0: i32) -> (i32, i32) {
    %c0_i32 = arith.constant 0 : i32
    %c0_i32_0 = arith.constant 0 : i32
    %c0_i32_1 = arith.constant 0 : i32
    return %c0_i32, %c0_i32_0 : i32, i32
  }
  func.func @transform_2(%arg0: i32) -> (i32, i32) {
    %c0_i32 = arith.constant 0 : i32
    %c0_i32_0 = arith.constant 0 : i32
    %c0_i32_1 = arith.constant 0 : i32
    return %c0_i32, %c0_i32_0 : i32, i32
  }
  func.func @transform_3(%arg0: i32) -> (i32, i32) {
    %c0_i32 = arith.constant 0 : i32
    %c0_i32_0 = arith.constant 0 : i32
    return %arg0, %c0_i32 : i32, i32
  }
}

</mosaic_0001>

<llo_original>
// kernel: tpu_custom_call.1
$region0: #{tpu_custom_call.1}
  #allocation0 [shape = 'u32[]', space=smem, size = 0x4, offset = 0x4, fixed_abs, tag = 'smem constant byte address 0x4 - core index']
  #allocation1 [shape = 'u32[144,128]{1,0:T(1,128)}', space=vmem, size = 0x12000, scoped, tag = 'internal scratch']
  %s0 = inlined_call_operand.hbm [shape: f32[16,32], index: 0, kind: input, shape index: {}]
  %s1 = inlined_call_operand.hbm [shape: f32[32,96], index: 1, kind: input, shape index: {}]
  %s2 = inlined_call_operand.vmem [shape: f32[1,96], index: 2, kind: input, shape index: {}]
  %s3 = inlined_call_operand.hbm [shape: f32[16,96], index: 3, kind: output, shape index: {}]
  %s4 = sld [smem:[#allocation0]]
  $region30: #{tpu_custom_call.1} parent=0
    _
  %s6 = ssub.s32 1, %s4
  %s7 = scalar_select 0, %s6, %s4
  $region1: #{tpu_custom_call.1} parent=0
    #allocation2 [shape = 'u8[8192]{0}', space=vmem, size = 0x2000, scoped, tag = 'input window, operand 0, single buffered']
    #allocation3 [shape = 's32[1]{0}', space=sflag, size = 0x4, scoped, tag = 'scoped memory for tpu_custom_call.1']
    #allocation4 [shape = 's32[1]{0}', space=sflag, size = 0x4, scoped, tag = 'scoped memory for tpu_custom_call.1']
    #allocation5 [shape = 'u8[16384]{0}', space=vmem, size = 0x4000, scoped, tag = 'input window, operand 1, single buffered']
    #allocation6 [shape = 's32[1]{0}', space=sflag, size = 0x4, scoped, tag = 'scoped memory for tpu_custom_call.1']
    #allocation7 [shape = 'u8[8192]{0}', space=vmem, size = 0x2000, scoped, tag = 'output window, operand 0, single buffered']
    %8 = vsyncpa [#allocation3], 0
    %9 = vsyncpa [#allocation6], 0
    %10 = vsyncpa [#allocation4], 0
    // Predicated region
    $region2: #{tpu_custom_call.1} parent=1 // pred_check
      _
    $region3: #{tpu_custom_call.1} parent=1 // pred_check_branch
      %12 = sbr.rel (0) target = $region5
    $region4: #{tpu_custom_call.1} parent=1 // pred_region
      %s14 = ssub.s32 256, 256
      %15 = vsyncadd [#allocation3], %s14
      %s16 = sshll.u32 [#allocation2], 4
      %s17 = int_to_ptr.vmem [resolvable:$true] %s16
      %22 = dma.hbm_to_vmem [thread:$0]  %s0, 256, %s17, [#allocation3], 128, 128, 8
    $region5: #{tpu_custom_call.1} parent=1 // pred_fallthru
      _
    // Predicated region
    $region6: #{tpu_custom_call.1} parent=1 // pred_check
      _
    $region7: #{tpu_custom_call.1} parent=1 // pred_check_branch
      %24 = sbr.rel (0) target = $region9
    $region8: #{tpu_custom_call.1} parent=1 // pred_region
      %s26 = ssub.s32 512, 512
      %27 = vsyncadd [#allocation6], %s26
      %s28 = sshll.u32 [#allocation5], 4
      %s29 = int_to_ptr.vmem [resolvable:$true] %s28
      %34 = dma.hbm_to_vmem [thread:$0]  %s1, 512, %s29, [#allocation6], 128, 128, 8
    $region9: #{tpu_custom_call.1} parent=1 // pred_fallthru
      _
    // Predicated region
    $region10: #{tpu_custom_call.1} parent=1 // pred_check
      _
    $region11: #{tpu_custom_call.1} parent=1 // pred_check_branch
      %36 = sbr.rel (0) target = $region13
    $region12: #{tpu_custom_call.1} parent=1 // pred_region
      _
    $region13: #{tpu_custom_call.1} parent=1 // pred_fallthru
      _
    // Predicated region
    $region14: #{tpu_custom_call.1} parent=1 // pred_check
      _
    $region15: #{tpu_custom_call.1} parent=1 // pred_check_branch
      %38 = sbr.rel (0) target = $region17
    $region16: #{tpu_custom_call.1} parent=1 // pred_region
      %39 = dma.done [#allocation3], 256
    $region17: #{tpu_custom_call.1} parent=1 // pred_fallthru
      _
    // Predicated region
    $region18: #{tpu_custom_call.1} parent=1 // pred_check
      _
    $region19: #{tpu_custom_call.1} parent=1 // pred_check_branch
      %41 = sbr.rel (0) target = $region21
    $region20: #{tpu_custom_call.1} parent=1 // pred_region
      %42 = dma.done [#allocation6], 512
    $region21: #{tpu_custom_call.1} parent=1 // pred_fallthru
      _
    %v43 = vld [vmem:[#allocation2] sm:$0xff]
    %v44 = vld [vmem:[#allocation2 + $0x8] sm:$0xff]
    %v45 = vld [vmem:[#allocation5] sm:$0xff]
    %v46 = vld [vmem:[#allocation5 + $0x8] sm:$0xff]
    %v47 = vld [vmem:[#allocation5 + $0x10] sm:$0xff]
    %v48 = vld [vmem:[#allocation5 + $0x18] sm:$0xff]
    %v49 = vld [vmem:[%s2] sm:$0x1]
    %v51 = vlaneseq
    %v52 = vshrl.u32 %v51, 7
    %v53 = vsub.s32 0, %v52
    %v54 = vrot.slane %v49, %v53
    %vm56 = vcmask 261120
    %v58 = vsel %vm56, %v43, 0
    %v61 = vsel %vm56, %v44, 0
    %63 = vmatprep.subr.mxu0 0.0
    %64 = vmatpush1.msra.mxu0 %v45
    %65 = vmatprep.subr.mxu0 0.0
    %66 = vmatpush1.msra.mxu0 %v46
    %67 = vmatprep.subr.mxu0 0.0
    %68 = vmatpush1.msra.mxu0 %v47
    %69 = vmatprep.subr.mxu0 0.0
    %70 = vmatpush1.msra.mxu0 %v48
    %71 = vmatprep.subr.mxu0 0.0
    %72 = vmatpush1.msra.mxu0 0.0
    %73 = vmatprep.subr.mxu0 0.0
    %74 = vmatpush1.msra.mxu0 0.0
    %75 = vmatprep.subr.mxu0 0.0
    %76 = vmatpush1.msra.mxu0 0.0
    %77 = vmatprep.subr.mxu0 0.0
    %78 = vmatpush1.msra.mxu0 0.0
    %79 = vmatprep.subr.mxu0 0.0
    %80 = vmatpush1.msra.mxu0 0.0
    %81 = vmatprep.subr.mxu0 0.0
    %82 = vmatpush1.msra.mxu0 0.0
    %83 = vmatprep.subr.mxu0 0.0
    %84 = vmatpush1.msra.mxu0 0.0
    %85 = vmatprep.subr.mxu0 0.0
    %86 = vmatpush1.msra.mxu0 0.0
    %87 = vmatprep.subr.mxu0 0.0
    %88 = vmatpush1.msra.mxu0 0.0
    %89 = vmatprep.subr.mxu0 0.0
    %90 = vmatpush1.msra.mxu0 0.0
    %91 = vmatprep.subr.mxu0 0.0
    %92 = vmatpush1.msra.mxu0 0.0
    %93 = vmatprep.subr.mxu0 0.0
    %94 = vmatpush1.msra.mxu0 0.0
    %95 = vmatprep.subr.mxu0 0.0
    %96 = vmatpush1.msra.mxu0 0.0
    %97 = vmatprep.subr.mxu0 0.0
    %98 = vmatpush1.msra.mxu0 0.0
    %99 = vmatprep.subr.mxu0 0.0
    %100 = vmatpush1.msra.mxu0 0.0
    %101 = vmatprep.subr.mxu0 0.0
    %102 = vmatpush1.msra.mxu0 0.0
    %103 = vmatprep.subr.mxu0 0.0
    %104 = vmatpush1.msra.mxu0 0.0
    %105 = vmatprep.subr.mxu0 0.0
    %106 = vmatpush1.msra.mxu0 0.0
    %107 = vmatprep.subr.mxu0 0.0
    %108 = vmatpush1.msra.mxu0 0.0
    %109 = vmatprep.subr.mxu0 0.0
    %110 = vmatpush1.msra.mxu0 0.0
    %111 = vmatprep.subr.mxu0 0.0
    %112 = vmatpush1.msra.mxu0 0.0
    %113 = vmatprep.subr.mxu0 0.0
    %114 = vmatpush1.msra.mxu0 0.0
    %115 = vmatprep.subr.mxu0 0.0
    %116 = vmatpush1.msra.mxu0 0.0
    %117 = vmatprep.subr.mxu0 0.0
    %118 = vmatpush1.msra.mxu0 0.0
    %119 = vmatprep.subr.mxu0 0.0
    %120 = vmatpush1.msra.mxu0 0.0
    %121 = vmatprep.subr.mxu0 0.0
    %122 = vmatpush1.msra.mxu0 0.0
    %123 = vmatprep.subr.mxu0 0.0
    %124 = vmatpush1.msra.mxu0 0.0
    %125 = vmatprep.subr.mxu0 0.0
    %126 = vmatpush1.msra.mxu0 0.0
    %127 = vmatprep.mubr.f32.mxu0 0.0
    %128 = vmatmul.mubr.f32.gmra.mrb[0].mxu0 %v58
    %v129 = vpop.f32.mrb[0].mxu0
    %v130 = vadd.f32 %v54, %v129
    %v131 = vpop.f32.mrb[0].mxu0
    %132 = vmatprep.mubr.f32.mxu0 0.0
    %133 = vmatmul.mubr.f32.gmra.mrb[0].mxu0 %v61
    %v134 = vpop.f32.mrb[0].mxu0
    %v135 = vadd.f32 %v54, %v134
    %v136 = vpop.f32.mrb[0].mxu0
    %137 = vdwg.mxu0
    %vm138 = vcmask 785408
    %139 = vst.msk [vmem:[#allocation7] sm:$0xff] %vm138, %v130
    %140 = vst.msk [vmem:[#allocation7 + $0x8] sm:$0xff] %vm138, %v135
    // Predicated region
    $region22: #{tpu_custom_call.1} parent=1 // pred_check
      _
    $region23: #{tpu_custom_call.1} parent=1 // pred_check_branch
      %142 = sbr.rel (0) target = $region25
    $region24: #{tpu_custom_call.1} parent=1 // pred_region
      %s144 = ssub.s32 256, 256
      %145 = vsyncadd [#allocation4], %s144
      %s146 = sshll.u32 [#allocation7], 4
      %s147 = int_to_ptr.vmem [resolvable:$true] %s146
      %152 = dma.vmem_to_hbm [thread:$0]  %s147, 256, %s3, [#allocation4], 128, 128, 8
    $region25: #{tpu_custom_call.1} parent=1 // pred_fallthru
      _
    // Predicated region
    $region26: #{tpu_custom_call.1} parent=1 // pred_check
      _
    $region27: #{tpu_custom_call.1} parent=1 // pred_check_branch
      %154 = sbr.rel (0) target = $region29
    $region28: #{tpu_custom_call.1} parent=1 // pred_region
      %155 = dma.done [#allocation4], 256
    $region29: #{tpu_custom_call.1} parent=1 // pred_fallthru
      _
    %156 = vsyncpa [#allocation3], 1
    %157 = vsyncpa [#allocation6], 1
    %158 = vsyncpa [#allocation4], 1

</llo_original>
